<compile_context>
chip_gen: v7x
topology: tpu7x:2x2x1
jax: 0.10.0
libtpu: 0.0.40
codegen_flags: <defaults>
</compile_context>

<pallas_src>
import numpy as np
import jax
import jax.numpy as jnp
from jax.experimental import pallas as pl
from jax.experimental.pallas import tpu as pltpu


# ----------------------------------------------------------------------------
# Host-side weight construction (pure numpy, trace time only).
# ----------------------------------------------------------------------------
def _bilinear_crop_weights(in_size: int, out_size: int,
                           crop_start: int, crop_len: int) -> np.ndarray:
    """Rows of the (out_size, in_size) bilinear matrix restricted to the crop."""
    i = np.arange(crop_start, crop_start + crop_len, dtype=np.float64)
    scale = in_size / out_size
    # PyTorch area_pixel_compute_source_index (align_corners=False), clamped at 0.
    src = np.maximum((i + 0.5) * scale - 0.5, 0.0)
    i0 = np.minimum(np.floor(src).astype(np.int64), in_size - 1)
    i1 = np.minimum(i0 + 1, in_size - 1)
    frac = (src - i0).astype(np.float64)
    w = np.zeros((crop_len, in_size), dtype=np.float32)
    rows = np.arange(crop_len)
    w[rows, i0] += (1.0 - frac).astype(np.float32)
    w[rows, i1] += frac.astype(np.float32)
    return w


def _resize_output_hw(h: int, w: int, resize_size: int):
    """torchvision F.resize with a single int: shorter edge -> resize_size."""
    if h <= w:
        new_h = resize_size
        new_w = int(resize_size * w / h)
    else:
        new_w = resize_size
        new_h = int(resize_size * h / w)
    return new_h, new_w


def _plane_batch(n_planes: int, H: int, W: int, crop_h: int, crop_w: int,
                 in_itemsize: int, out_itemsize: int, row_first: bool,
                 budget_bytes: int, min_steps: int = 4) -> int:
    """Planes per grid step.

    Prefers pipeline depth (>= min_steps grid steps, even step count so both
    v7x TensorCores get equal work) over maximal tile size; among candidates
    satisfying the depth requirement it takes the largest divisor of n_planes
    whose per-step VMEM footprint fits the budget.
    """
    def footprint(p):
        inp = 2 * p * H * W * in_itemsize                 # double-buffered input block
        outp = 2 * p * crop_h * crop_w * out_itemsize     # double-buffered output block
        wts = 2 * (crop_h * H + W * crop_w) * 2           # double-buffered bf16 weights
        if row_first:
            interm = (H * W * 2 + crop_h * W * 4          # per-plane bf16 img + f32 row pass
                      + crop_h * W * 2                    # bf16 copy for column pass
                      + crop_h * crop_w * 4)              # per-plane f32 result
        else:
            interm = (p * H * W * 2                       # bf16 flattened input copy
                      + p * H * crop_w * 4                # f32 column-pass result
                      + p * H * crop_w * 2                # bf16 copy for row pass
                      + crop_h * crop_w * 4)              # per-plane f32 result
        return inp + outp + wts + interm

    fitting = [p for p in range(1, n_planes + 1)
               if n_planes % p == 0 and footprint(p) <= budget_bytes]
    if not fitting:
        # TODO(synk): spatial tiling for planes too large for VMEM.
        return 1

    def candidates(steps_req, need_even):
        return [p for p in fitting
                if (n_planes // p) >= steps_req
                and (not need_even or (n_planes // p) % 2 == 0)]

    for steps_req, need_even in ((min_steps, True), (min_steps, False),
                                 (2, True), (2, False), (1, False)):
        cands = candidates(steps_req, need_even)
        if cands:
            return max(cands)
    return max(fitting)


# ----------------------------------------------------------------------------
# Kernel factory: P image planes per grid step.
# ----------------------------------------------------------------------------
def _make_resize_crop_kernel(row_first: bool, scale: float):
    """bf16 operands on the MXU, f32 accumulation, f32 scale in the epilogue."""

    def kernel(img_ref, wy_ref, wxt_ref, o_ref):
        # img_ref : (P, H, W)           uint8 or bf16 input planes
        # wy_ref  : (crop_h, H)         bf16 row weights (crop folded in)
        # wxt_ref : (W, crop_w)         bf16 column weights, transposed
        # o_ref   : (P, crop_h, crop_w) output planes
        p, h, w = img_ref.shape
        crop_w = wxt_ref.shape[1]
        wy = wy_ref[...]
        wxt = wxt_ref[...]

        def epilogue(i, acc_f32):
            if scale != 1.0:
                acc_f32 = acc_f32 * scale       # convert_image_dtype (f32, free)
            o_ref[i] = acc_f32.astype(o_ref.dtype)

        if row_first:
            # Reduce H first (per plane), then W: fewer MACs when W < H.
            for i in range(p):
                xi = img_ref[i].astype(jnp.bfloat16)                       # (H, W)
                ri = jnp.dot(wy, xi, preferred_element_type=jnp.float32)   # (crop_h, W)
                oi = jnp.dot(ri.astype(jnp.bfloat16), wxt,
                             preferred_element_type=jnp.float32)           # (crop_h, crop_w)
                epilogue(i, oi)
        else:
            # Column pass as ONE flattened matmul (M = P*H fills the MXU),
            # then per-plane row pass with per-plane stores (no Wy broadcast).
            img2d = img_ref[...].reshape(p * h, w).astype(jnp.bfloat16)    # (P*H, W)
            t = jnp.dot(img2d, wxt, preferred_element_type=jnp.float32)    # (P*H, crop_w)
            t = t.reshape(p, h, crop_w).astype(jnp.bfloat16)               # (P, H, crop_w)
            for i in range(p):
                oi = jnp.dot(wy, t[i], preferred_element_type=jnp.float32) # (crop_h, crop_w)
                epilogue(i, oi)

    return kernel


# ----------------------------------------------------------------------------
# Wrapper (= module.forward).
# ----------------------------------------------------------------------------
def no_normalization_image_classification(img: jax.Array,
                                          *,
                                          crop_size: int,
                                          resize_size: int = 256,
                                          out_dtype=jnp.float32) -> jax.Array:
    squeeze_batch = (img.ndim == 3)
    if squeeze_batch:
        img = img[None]
    B, C, H, W = img.shape

    rh, rw = _resize_output_hw(H, W, resize_size)
    top = int(round((rh - crop_size) / 2.0))
    left = int(round((rw - crop_size) / 2.0))
    if top < 0 or left < 0:
        # TODO(synk): torchvision center_crop zero-pads in this case.
        raise NotImplementedError("crop_size larger than resized image not supported")

    # convert_image_dtype: identity for float inputs, x / 255 for uint8
    # (the 1/255 is applied in f32 in the kernel epilogue).
    if img.dtype == jnp.uint8:
        scale = 1.0 / 255.0
        planes = img.reshape(B * C, H, W)                    # DMA raw uint8
        in_itemsize = 1
    elif jnp.issubdtype(img.dtype, jnp.floating):
        scale = 1.0
        planes = img.reshape(B * C, H, W).astype(jnp.bfloat16)
        in_itemsize = 2
    else:
        raise NotImplementedError("only float and uint8 images are supported")

    wy = jnp.asarray(_bilinear_crop_weights(H, rh, top, crop_size),
                     dtype=jnp.bfloat16)                     # (crop, H)
    wxt = jnp.asarray(_bilinear_crop_weights(W, rw, left, crop_size).T,
                      dtype=jnp.bfloat16)                    # (W, crop)

    # Trace-time pass order: reduce the more expensive axis first.
    col_first_macs = H * crop_size * (W + crop_size)
    row_first_macs = crop_size * W * (H + crop_size)
    row_first = row_first_macs < col_first_macs

    n_planes = B * C
    out_itemsize = jnp.dtype(out_dtype).itemsize
    # 24 MiB working-set budget inside a 48 MiB scoped-VMEM limit: safe on
    # v7x's 64 MiB physical VMEM, conservative on v5e/v6e's 128 MiB.
    P = _plane_batch(n_planes, H, W, crop_size, crop_size, in_itemsize,
                     out_itemsize, row_first, budget_bytes=24 * 1024 * 1024)

    out = pl.pallas_call(
        _make_resize_crop_kernel(row_first, scale),
        out_shape=jax.ShapeDtypeStruct((n_planes, crop_size, crop_size),
                                       out_dtype),
        grid_spec=pltpu.PrefetchScalarGridSpec(
            num_scalar_prefetch=0,
            grid=(n_planes // P,),
            in_specs=[
                pl.BlockSpec((P, H, W), lambda n: (n, 0, 0)),
                pl.BlockSpec((crop_size, H), lambda n: (0, 0)),
                pl.BlockSpec((W, crop_size), lambda n: (0, 0)),
            ],
            out_specs=pl.BlockSpec((P, crop_size, crop_size),
                                   lambda n: (n, 0, 0)),
        ),
        compiler_params=pltpu.CompilerParams(
            dimension_semantics=("parallel",),
            vmem_limit_bytes=48 * 1024 * 1024),
    )(planes, wy, wxt)

    out = out.reshape(B, C, crop_size, crop_size)
    if squeeze_batch:
        out = out[0]
    return out


# ----------------------------------------------------------------------------
# Pure-JAX f32 reference of the same operator (for numeric checking).
# ----------------------------------------------------------------------------
def _reference(img_f32: jax.Array, crop_size: int, resize_size: int) -> jax.Array:
    B, C, H, W = img_f32.shape
    rh, rw = _resize_output_hw(H, W, resize_size)
    top = int(round((rh - crop_size) / 2.0))
    left = int(round((rw - crop_size) / 2.0))
    wy = jnp.asarray(_bilinear_crop_weights(H, rh, top, crop_size))
    wx = jnp.asarray(_bilinear_crop_weights(W, rw, left, crop_size))
    planes = img_f32.reshape(B * C, H, W)
    out = jnp.einsum("oh,nhw,pw->nop", wy, planes, wx)
    return out.reshape(B, C, crop_size, crop_size)


if __name__ == "__main__":
    RESIZE, CROP = 32, 24
    key = jax.random.PRNGKey(0)
    k_f, k_u, k_t = jax.random.split(key, 3)

    # ---- float image path (square; column-first order) ----------------------
    B, C, H, W = 2, 3, 16, 16
    img = jax.random.uniform(k_f, (B, C, H, W), dtype=jnp.float32)
    out = no_normalization_image_classification(img, crop_size=CROP,
                                                resize_size=RESIZE)
    out = jax.block_until_ready(out)
    assert out.shape == (B, C, CROP, CROP) and out.dtype == jnp.float32
    ref = _reference(img, CROP, RESIZE)
    np.testing.assert_allclose(np.asarray(out), np.asarray(ref),
                               rtol=2e-2, atol=2e-2)

    # ---- uint8 image path (convert_image_dtype = x / 255) -------------------
    img_u8 = jax.random.randint(k_u, (B, C, H, W), 0, 256,
                                dtype=jnp.int32).astype(jnp.uint8)
    out_u8 = no_normalization_image_classification(img_u8, crop_size=CROP,
                                                   resize_size=RESIZE)
    out_u8 = jax.block_until_ready(out_u8)
    assert out_u8.shape == (B, C, CROP, CROP) and out_u8.dtype == jnp.float32
    ref_u8 = _reference(img_u8.astype(jnp.float32) / 255.0, CROP, RESIZE)
    np.testing.assert_allclose(np.asarray(out_u8), np.asarray(ref_u8),
                               rtol=2e-2, atol=2e-2)

    # ---- tall image (W < H -> row-first pass order) --------------------------
    Bt, Ct, Ht, Wt = 1, 3, 32, 16
    img_t = jax.random.uniform(k_t, (Bt, Ct, Ht, Wt), dtype=jnp.float32)
    out_t = no_normalization_image_classification(img_t, crop_size=CROP,
                                                  resize_size=RESIZE)
    out_t = jax.block_until_ready(out_t)
    assert out_t.shape == (Bt, Ct, CROP, CROP) and out_t.dtype == jnp.float32
    ref_t = _reference(img_t, CROP, RESIZE)
    np.testing.assert_allclose(np.asarray(out_t), np.asarray(ref_t),
                               rtol=2e-2, atol=2e-2)

    print("KERNEL_OK")
</pallas_src>

<mosaic_0001>
module attributes {stable_mosaic.version = 11 : i64} {
  func.func @kernel(%arg0: i32, %arg1: memref<1x16x16xbf16, #tpu.memory_space<vmem>>, %arg2: memref<24x16xbf16, #tpu.memory_space<vmem>>, %arg3: memref<16x24xbf16, #tpu.memory_space<vmem>>, %arg4: memref<1x24x24xf32, #tpu.memory_space<vmem>>) attributes {dimension_semantics = [#tpu.dimension_semantics<parallel>], iteration_bounds = array<i64: 6>, scalar_prefetch = 0 : i64, scratch_operands = 0 : i64, tpu.core_type = #tpu.core_type<tc>, window_params = [{transform_indices = @transform_0, window_bounds = array<i64: 1, 16, 16>}, {pipeline_mode = #tpu.pipeline_mode<synchronous>, transform_indices = @transform_1, window_bounds = array<i64: 24, 16>}, {pipeline_mode = #tpu.pipeline_mode<synchronous>, transform_indices = @transform_2, window_bounds = array<i64: 16, 24>}, {transform_indices = @transform_3, window_bounds = array<i64: 1, 24, 24>}]} {
    %c0 = arith.constant 0 : index
    %c0_0 = arith.constant 0 : index
    %0 = vector.load %arg2[%c0, %c0_0] : memref<24x16xbf16, #tpu.memory_space<vmem>>, vector<24x16xbf16>
    %c0_1 = arith.constant 0 : index
    %c0_2 = arith.constant 0 : index
    %1 = vector.load %arg3[%c0_1, %c0_2] : memref<16x24xbf16, #tpu.memory_space<vmem>>, vector<16x24xbf16>
    %c0_3 = arith.constant 0 : index
    %c0_4 = arith.constant 0 : index
    %c0_5 = arith.constant 0 : index
    %2 = vector.load %arg1[%c0_3, %c0_4, %c0_5] : memref<1x16x16xbf16, #tpu.memory_space<vmem>>, vector<1x16x16xbf16>
    %3 = vector.shape_cast %2 : vector<1x16x16xbf16> to vector<16x16xbf16>
    %cst = arith.constant dense<0.000000e+00> : vector<16x24xf32>
    %4 = tpu.matmul %3, %1, %cst {dimension_numbers = #tpu.dot_dimension_numbers<[1], [0], [0], [1], [0, 0, 1, 1], [], []>} : vector<16x16xbf16>, vector<16x24xbf16>, vector<16x24xf32> -> vector<16x24xf32>
    %5 = vector.shape_cast %4 : vector<16x24xf32> to vector<1x16x24xf32>
    %6 = arith.truncf %5 : vector<1x16x24xf32> to vector<1x16x24xbf16>
    %7 = vector.shape_cast %6 : vector<1x16x24xbf16> to vector<16x24xbf16>
    %cst_6 = arith.constant dense<0.000000e+00> : vector<24x24xf32>
    %8 = tpu.matmul %0, %7, %cst_6 {dimension_numbers = #tpu.dot_dimension_numbers<[1], [0], [0], [1], [0, 0, 1, 1], [], []>} : vector<24x16xbf16>, vector<16x24xbf16>, vector<24x24xf32> -> vector<24x24xf32>
    %c0_7 = arith.constant 0 : index
    %c0_8 = arith.constant 0 : index
    %c0_9 = arith.constant 0 : index
    %9 = vector.load %arg4[%c0_7, %c0_8, %c0_9] : memref<1x24x24xf32, #tpu.memory_space<vmem>>, vector<1x24x24xf32>
    %10 = vector.shape_cast %9 : vector<1x24x24xf32> to vector<24x24xf32>
    %11 = vector.shape_cast %8 : vector<24x24xf32> to vector<1x24x24xf32>
    tpu.vector_store %arg4[%c0_7, %c0_8, %c0_9], %11 {strides = array<i32>} : memref<1x24x24xf32, #tpu.memory_space<vmem>>, vector<1x24x24xf32>,
    return
  }
  func.func @transform_0(%arg0: i32) -> (i32, i32, i32) {
    %c0_i32 = arith.constant 0 : i32
    %c0_i32_0 = arith.constant 0 : i32
    %c0_i32_1 = arith.constant 0 : i32
    return %arg0, %c0_i32, %c0_i32_0 : i32, i32, i32
  }
  func.func @transform_1(%arg0: i32) -> (i32, i32) {
    %c0_i32 = arith.constant 0 : i32
    %c0_i32_0 = arith.constant 0 : i32
    %c0_i32_1 = arith.constant 0 : i32
    return %c0_i32, %c0_i32_0 : i32, i32
  }
  func.func @transform_2(%arg0: i32) -> (i32, i32) {
    %c0_i32 = arith.constant 0 : i32
    %c0_i32_0 = arith.constant 0 : i32
    %c0_i32_1 = arith.constant 0 : i32
    return %c0_i32, %c0_i32_0 : i32, i32
  }
  func.func @transform_3(%arg0: i32) -> (i32, i32, i32) {
    %c0_i32 = arith.constant 0 : i32
    %c0_i32_0 = arith.constant 0 : i32
    %c0_i32_1 = arith.constant 0 : i32
    return %arg0, %c0_i32, %c0_i32_0 : i32, i32, i32
  }
}

</mosaic_0001>

<llo_original>
// kernel: tpu_custom_call.1
$region0: #{tpu_custom_call.1}
  #allocation0 [shape = 'u32[]', space=smem, size = 0x4, offset = 0x4, fixed_abs, tag = 'smem constant byte address 0x4 - core index']
  #allocation1 [shape = 'u32[144,128]{1,0:T(1,128)}', space=vmem, size = 0x12000, scoped, tag = 'internal scratch']
  %s0 = inlined_call_operand.hbm [shape: bf16[6,16,16], index: 0, kind: input, shape index: {}]
  %s1 = inlined_call_operand.vmem [shape: bf16[24,16], index: 1, kind: input, shape index: {}]
  %s2 = inlined_call_operand.vmem [shape: bf16[16,24], index: 2, kind: input, shape index: {}]
  %s3 = inlined_call_operand.hbm [shape: f32[6,24,24], index: 3, kind: output, shape index: {}]
  %s4 = sld [smem:[#allocation0]]
  $region49: #{tpu_custom_call.1} parent=0
    _
  %s6 = ssub.s32 1, %s4
  %s7 = scalar_select 0, %s6, %s4
  $region1: #{tpu_custom_call.1} parent=0
    #allocation2 [shape = 'u8[8192]{0}', space=vmem, size = 0x2000, scoped, tag = 'input window, operand 0']
    #allocation3 [shape = 's32[2]{0}', space=sflag, size = 0x8, scoped, tag = 'scoped memory for tpu_custom_call.1']
    #allocation4 [shape = 's32[2]{0}', space=sflag, size = 0x8, scoped, tag = 'scoped memory for tpu_custom_call.1']
    #allocation5 [shape = 'u8[24576]{0}', space=vmem, size = 0x6000, scoped, tag = 'output window, operand 0']
    %8 = vsyncpa [#allocation3], 0
    %s9 = scalar_lea.sflag [#allocation3], 1
    %10 = vsyncpa %s9, 0
    %11 = vsyncpa [#allocation4], 0
    %s12 = scalar_lea.sflag [#allocation4], 1
    %13 = vsyncpa %s12, 0
    loop: start=0, step=1, limit=8
    $region2: #{tpu_custom_call.1} parent=1 // loop_pre_header
      _
    $region3: #{tpu_custom_call.1} parent=1 // loop_header
      %s15 = sphi 0, %s19
      %p16 = scmp.ge.s32.totalorder %s15, 8
      %s25 = sphi 0, %s27
      %s28 = sphi 0, %s25
      %s29 = sphi 0, %s28
      %s45 = sphi 0, %s29
      %s49 = sphi 0, %s49
      %s51 = sphi 0, %s49
      %s52 = sphi 0, %s51
      %s66 = sphi 0, %s52
      %s70 = sphi 0, %s70
      %s72 = sphi 0, %s70
      %s73 = sphi 0, %s72
      %s87 = sphi 0, %s73
      %s93 = sphi 0, %s95
      %s96 = sphi 0, %s93
      %s97 = sphi 0, %s96
      %s113 = sphi 0, %s97
    $region4: #{tpu_custom_call.1} parent=1 // loop_header_branch
      %18 = sbr.rel (%p16) target = $region8
    $region5: #{tpu_custom_call.1} parent=1 // loop_body
      %s20 = ssub.s32 %s15, 1
      %s21 = ssub.s32 %s15, 2
      %s22 = sadd.s32 %s15, 1
      %s23 = ssub.s32 %s15, %s22
      %p24 = scmp.eq.s32.totalorder %s23, 0
      %s26 = sadd.s32 %s25, 1
      %s27 = scalar_select %p24, %s25, %s26
      %p30 = pneg %p24
      %p31 = scmp.eq.s32.totalorder %s15, 5
      %p32 = por %p30, %p31
      %p33 = scmp.ne.s32.totalorder %s25, %s28
      %p34 = scmp.eq.s32.totalorder %s15, 0
      %p35 = por %p33, %p34
      %p36 = scmp.ne.s32.totalorder %s25, %s28
      %p37 = scmp.eq.s32.totalorder %s20, 5
      %p38 = por %p36, %p37
      %p39 = scmp.ne.s32.totalorder %s28, %s29
      %p40 = scmp.eq.s32.totalorder %s20, 0
      %p41 = por %p39, %p40
      %p42 = scmp.ne.s32.totalorder %s28, %s29
      %p43 = scmp.eq.s32.totalorder %s21, 5
      %p44 = por %p42, %p43
      %p46 = scmp.ne.s32.totalorder %s29, %s45
      %p47 = scmp.eq.s32.totalorder %s21, 0
      %p48 = por %p46, %p47
      %s50 = sadd.s32 %s49, 1
      %p53 = scmp.eq.s32.totalorder %s15, 5
      %p54 = scmp.ne.s32.totalorder %s49, %s51
      %p55 = scmp.eq.s32.totalorder %s15, 0
      %p56 = por %p54, %p55
      %p57 = scmp.ne.s32.totalorder %s49, %s51
      %p58 = scmp.eq.s32.totalorder %s20, 5
      %p59 = por %p57, %p58
      %p60 = scmp.ne.s32.totalorder %s51, %s52
      %p61 = scmp.eq.s32.totalorder %s20, 0
      %p62 = por %p60, %p61
      %p63 = scmp.ne.s32.totalorder %s51, %s52
      %p64 = scmp.eq.s32.totalorder %s21, 5
      %p65 = por %p63, %p64
      %p67 = scmp.ne.s32.totalorder %s52, %s66
      %p68 = scmp.eq.s32.totalorder %s21, 0
      %p69 = por %p67, %p68
      %s71 = sadd.s32 %s70, 1
      %p74 = scmp.eq.s32.totalorder %s15, 5
      %p75 = scmp.ne.s32.totalorder %s70, %s72
      %p76 = scmp.eq.s32.totalorder %s15, 0
      %p77 = por %p75, %p76
      %p78 = scmp.ne.s32.totalorder %s70, %s72
      %p79 = scmp.eq.s32.totalorder %s20, 5
      %p80 = por %p78, %p79
      %p81 = scmp.ne.s32.totalorder %s72, %s73
      %p82 = scmp.eq.s32.totalorder %s20, 0
      %p83 = por %p81, %p82
      %p84 = scmp.ne.s32.totalorder %s72, %s73
      %p85 = scmp.eq.s32.totalorder %s21, 5
      %p86 = por %p84, %p85
      %p88 = scmp.ne.s32.totalorder %s73, %s87
      %p89 = scmp.eq.s32.totalorder %s21, 0
      %p90 = por %p88, %p89
      %s91 = ssub.s32 %s15, %s22
      %p92 = scmp.eq.s32.totalorder %s91, 0
      %s94 = sadd.s32 %s93, 1
      %s95 = scalar_select %p92, %s93, %s94
      %p98 = pneg %p92
      %p99 = scmp.eq.s32.totalorder %s15, 5
      %p100 = por %p98, %p99
      %p101 = scmp.ne.s32.totalorder %s93, %s96
      %p102 = scmp.eq.s32.totalorder %s15, 0
      %p103 = por %p101, %p102
      %p104 = scmp.ne.s32.totalorder %s93, %s96
      %p105 = scmp.eq.s32.totalorder %s20, 5
      %p106 = por %p104, %p105
      %p107 = scmp.ne.s32.totalorder %s96, %s97
      %p108 = scmp.eq.s32.totalorder %s20, 0
      %p109 = por %p107, %p108
      %p110 = scmp.ne.s32.totalorder %s96, %s97
      %p111 = scmp.eq.s32.totalorder %s21, 5
      %p112 = por %p110, %p111
      %p114 = scmp.ne.s32.totalorder %s97, %s113
      %p115 = scmp.eq.s32.totalorder %s21, 0
      %p116 = por %p114, %p115
      %p117 = scmp.le.s32.totalorder 1, %s15
      %p118 = scmp.lt.s32.totalorder %s15, 7
      %p119 = pnand %p117, %p118
      %p120 = pneg %p119
      // Predicated region
      $region9: #{tpu_custom_call.1} parent=5 // pred_check
        _
      $region10: #{tpu_custom_call.1} parent=5 // pred_check_branch
        %122 = sbr.rel (%p119) target = $region12
      $region11: #{tpu_custom_call.1} parent=5 // pred_region
        %s123 = ssub.s32 %s15, 1
        // Predicated region
        $region13: #{tpu_custom_call.1} parent=11 // pred_check
          %p124 = pneg %p62
        $region14: #{tpu_custom_call.1} parent=11 // pred_check_branch
          %126 = sbr.rel (%p124) target = $region16
        $region15: #{tpu_custom_call.1} parent=11 // pred_region
          _
        $region16: #{tpu_custom_call.1} parent=11 // pred_fallthru
          _
        // Predicated region
        $region17: #{tpu_custom_call.1} parent=11 // pred_check
          %p127 = pneg %p83
        $region18: #{tpu_custom_call.1} parent=11 // pred_check_branch
          %129 = sbr.rel (%p127) target = $region20
        $region19: #{tpu_custom_call.1} parent=11 // pred_region
          _
        $region20: #{tpu_custom_call.1} parent=11 // pred_fallthru
          _
      $region12: #{tpu_custom_call.1} parent=5 // pred_fallthru
        _
      %p130 = scmp.lt.s32.totalorder %s15, 6
      // Predicated region
      $region21: #{tpu_custom_call.1} parent=5 // pred_check
        %p131 = pneg %p130
      $region22: #{tpu_custom_call.1} parent=5 // pred_check_branch
        %133 = sbr.rel (%p131) target = $region24
      $region23: #{tpu_custom_call.1} parent=5 // pred_region
        // Predicated region
        $region25: #{tpu_custom_call.1} parent=23 // pred_check
          %p134 = pneg %p35
        $region26: #{tpu_custom_call.1} parent=23 // pred_check_branch
          %136 = sbr.rel (%p134) target = $region28
        $region27: #{tpu_custom_call.1} parent=23 // pred_region
          %s137 = sand.u32 %s25, 1
          %s138 = scalar_lea.sflag [#allocation3], %s137
          %s139 = sand.u32 %s25, 1
          %s140 = smul.addr %s139, 8
          %s141 = scalar_lea.vmem [#allocation2], %s140
          %s143 = ssub.s32 128, 128
          %144 = vsyncadd %s138, %s143
          %s145 = smul.addr %s15, 2
          %s146 = smul.addr %s145, 64
          %s147 = scalar_lea.hbm %s0, %s146
          %s148 = sshll.u32 %s141, 4
          %s149 = int_to_ptr.vmem [resolvable:$true] %s148
          %154 = dma.hbm_to_vmem [thread:$0]  %s147, 128, %s149, %s138, 64, 64, 4
        $region28: #{tpu_custom_call.1} parent=23 // pred_fallthru
          _
      $region24: #{tpu_custom_call.1} parent=5 // pred_fallthru
        _
      %p155 = scmp.le.s32.totalorder 1, %s15
      %p156 = scmp.lt.s32.totalorder %s15, 7
      %p157 = pnand %p155, %p156
      %p158 = pneg %p157
      // Predicated region
      $region29: #{tpu_custom_call.1} parent=5 // pred_check
        _
      $region30: #{tpu_custom_call.1} parent=5 // pred_check_branch
        %160 = sbr.rel (%p157) target = $region32
      $region31: #{tpu_custom_call.1} parent=5 // pred_region
        %s161 = ssub.s32 %s15, 1
        %s162 = sand.u32 %s28, 1
        %s163 = scalar_lea.sflag [#allocation3], %s162
        %s164 = sand.u32 %s28, 1
        %s165 = smul.addr %s164, 8
        %s166 = scalar_lea.vmem [#allocation2], %s165
        // Predicated region
        $region33: #{tpu_custom_call.1} parent=31 // pred_check
          %p167 = pneg %p41
        $region34: #{tpu_custom_call.1} parent=31 // pred_check_branch
          %169 = sbr.rel (%p167) target = $region36
        $region35: #{tpu_custom_call.1} parent=31 // pred_region
          %170 = dma.done %s163, 128
        $region36: #{tpu_custom_call.1} parent=31 // pred_fallthru
          _
        %s171 = sand.u32 %s28, 1
        %s172 = scalar_lea.sflag [#allocation3], %s171
        %s173 = sand.u32 %s28, 1
        %s174 = smul.addr %s173, 8
        %s175 = scalar_lea.vmem [#allocation2], %s174
        %p176 = pneg %p41
        %p177 = pneg %p38
        %p178 = pneg %p62
        %p179 = pneg %p59
        %p180 = pneg %p83
        %p181 = pneg %p80
        %p182 = pneg %p109
        %p183 = pneg %p106
        %s184 = sand.u32 %s96, 1
        %s185 = scalar_lea.sflag [#allocation4], %s184
        %s186 = sand.u32 %s96, 1
        %s187 = smul.addr %s186, 24
        %s188 = scalar_lea.vmem [#allocation5], %s187
        %v190 = vld [vmem:[%s1] sm:$0xf]
        %v191 = vld [vmem:[%s1 + $0x4] sm:$0xf]
        %v192 = vld [vmem:[%s1 + $0x8] sm:$0xf]
        %v193 = vld [vmem:[%s2] sm:$0xf]
        %v194 = vld [vmem:[%s2 + $0x4] sm:$0xf]
        %v195 = vld [vmem:[%s166] sm:$0xf]
        %v196 = vld [vmem:[%s166 + $0x4] sm:$0xf]
        %v199 = vunpack.c.l.b16 %v195
        %v200 = vunpack.c.l.b16 %v196
        %v201 = vpack.c.b16 %v200, %v199
        %v204 = vunpack.c.l.b16 %v193
        %v205 = vunpack.c.l.b16 %v194
        %v206 = vpack.c.b16 %v205, %v204
        %vm208 = vcmask 130048
        %v210 = vsel %vm208, %v201, 0
        %212 = vmatprep.subr.bf16.mxu0 0
        %213 = vmatpush1.bf16.msra.mxu0 %v206
        %214 = vmatprep.subr.bf16.mxu0 0
        %215 = vmatpush1.bf16.msra.mxu0 0
        %216 = vmatprep.subr.bf16.mxu0 0
        %217 = vmatpush1.bf16.msra.mxu0 0
        %218 = vmatprep.subr.bf16.mxu0 0
        %219 = vmatpush1.bf16.msra.mxu0 0
        %220 = vmatprep.subr.bf16.mxu0 0
        %221 = vmatpush1.bf16.msra.mxu0 0
        %222 = vmatprep.subr.bf16.mxu0 0
        %223 = vmatpush1.bf16.msra.mxu0 0
        %224 = vmatprep.subr.bf16.mxu0 0
        %225 = vmatpush1.bf16.msra.mxu0 0
        %226 = vmatprep.subr.bf16.mxu0 0
        %227 = vmatpush1.bf16.msra.mxu0 0
        %228 = vmatprep.subr.bf16.mxu0 0
        %229 = vmatpush1.bf16.msra.mxu0 0
        %230 = vmatprep.subr.bf16.mxu0 0
        %231 = vmatpush1.bf16.msra.mxu0 0
        %232 = vmatprep.subr.bf16.mxu0 0
        %233 = vmatpush1.bf16.msra.mxu0 0
        %234 = vmatprep.subr.bf16.mxu0 0
        %235 = vmatpush1.bf16.msra.mxu0 0
        %236 = vmatprep.subr.bf16.mxu0 0
        %237 = vmatpush1.bf16.msra.mxu0 0
        %238 = vmatprep.subr.bf16.mxu0 0
        %239 = vmatpush1.bf16.msra.mxu0 0
        %240 = vmatprep.subr.bf16.mxu0 0
        %241 = vmatpush1.bf16.msra.mxu0 0
        %242 = vmatprep.subr.bf16.mxu0 0
        %243 = vmatpush1.bf16.msra.mxu0 0
        %244 = vmatprep.mubr.bf16.mxu0 0
        %245 = vmatmul.mubr.bf16.gmra.mrb[0].mxu0 %v210
        %v246 = vpop.f32.mrb[0].mxu0
        %v247 = vadd.f32 0.0, %v246
        %v248 = vpop.f32.mrb[0].mxu0
        %v249 = vpop.f32.mrb[0].mxu0
        %v250 = vadd.f32 0.0, %v249
        %v251 = vpop.f32.mrb[0].mxu0
        %252 = vdwg.mxu0
        %v253 = vpack.c.bf16 %v250, %v247
        %v257 = vunpack.c.l.b16 %v190
        %v258 = vunpack.c.l.b16 %v191
        %v259 = vunpack.c.l.b16 %v192
        %v260 = vpack.c.b16 %v258, %v257
        %v261 = vpack.c.b16 %v259, %v259
        %v263 = vsel %vm208, %v260, 0
        %v266 = vsel %vm208, %v261, 0
        %268 = vmatprep.subr.bf16.mxu0 0
        %269 = vmatpush1.bf16.msra.mxu0 %v253
        %270 = vmatprep.subr.bf16.mxu0 0
        %271 = vmatpush1.bf16.msra.mxu0 0
        %272 = vmatprep.subr.bf16.mxu0 0
        %273 = vmatpush1.bf16.msra.mxu0 0
        %274 = vmatprep.subr.bf16.mxu0 0
        %275 = vmatpush1.bf16.msra.mxu0 0
        %276 = vmatprep.subr.bf16.mxu0 0
        %277 = vmatpush1.bf16.msra.mxu0 0
        %278 = vmatprep.subr.bf16.mxu0 0
        %279 = vmatpush1.bf16.msra.mxu0 0
        %280 = vmatprep.subr.bf16.mxu0 0
        %281 = vmatpush1.bf16.msra.mxu0 0
        %282 = vmatprep.subr.bf16.mxu0 0
        %283 = vmatpush1.bf16.msra.mxu0 0
        %284 = vmatprep.subr.bf16.mxu0 0
        %285 = vmatpush1.bf16.msra.mxu0 0
        %286 = vmatprep.subr.bf16.mxu0 0
        %287 = vmatpush1.bf16.msra.mxu0 0
        %288 = vmatprep.subr.bf16.mxu0 0
        %289 = vmatpush1.bf16.msra.mxu0 0
        %290 = vmatprep.subr.bf16.mxu0 0
        %291 = vmatpush1.bf16.msra.mxu0 0
        %292 = vmatprep.subr.bf16.mxu0 0
        %293 = vmatpush1.bf16.msra.mxu0 0
        %294 = vmatprep.subr.bf16.mxu0 0
        %295 = vmatpush1.bf16.msra.mxu0 0
        %296 = vmatprep.subr.bf16.mxu0 0
        %297 = vmatpush1.bf16.msra.mxu0 0
        %298 = vmatprep.subr.bf16.mxu0 0
        %299 = vmatpush1.bf16.msra.mxu0 0
        %300 = vmatprep.mubr.bf16.mxu0 0
        %301 = vmatmul.mubr.bf16.gmra.mrb[0].mxu0 %v263
        %v302 = vpop.f32.mrb[0].mxu0
        %v303 = vadd.f32 0.0, %v302
        %v304 = vpop.f32.mrb[0].mxu0
        %v305 = vpop.f32.mrb[0].mxu0
        %v306 = vadd.f32 0.0, %v305
        %v307 = vpop.f32.mrb[0].mxu0
        %308 = vmatprep.mubr.bf16.mxu0 0
        %309 = vmatmul.mubr.bf16.gmra.mrb[0].mxu0 %v266
        %v310 = vpop.f32.mrb[0].mxu0
        %v311 = vadd.f32 0.0, %v310
        %v312 = vpop.f32.mrb[0].mxu0
        %v313 = vpop.f32.mrb[0].mxu0
        %v314 = vpop.f32.mrb[0].mxu0
        %315 = vdwg.mxu0
        %vm316 = vcmask 195584
        %317 = vst.msk [vmem:[%s188] sm:$0xff] %vm316, %v303
        %318 = vst.msk [vmem:[%s188 + $0x8] sm:$0xff] %vm316, %v306
        %319 = vst.msk [vmem:[%s188 + $0x10] sm:$0xff] %vm316, %v311
        %s320 = sand.u32 %s96, 1
        %s321 = scalar_lea.sflag [#allocation4], %s320
        %s322 = sand.u32 %s96, 1
        %s323 = smul.addr %s322, 24
        %s324 = scalar_lea.vmem [#allocation5], %s323
        // Predicated region
        $region37: #{tpu_custom_call.1} parent=31 // pred_check
          %p325 = pneg %p106
        $region38: #{tpu_custom_call.1} parent=31 // pred_check_branch
          %327 = sbr.rel (%p325) target = $region40
        $region39: #{tpu_custom_call.1} parent=31 // pred_region
          %s329 = ssub.s32 384, 384
          %330 = vsyncadd %s321, %s329
          %s331 = smul.addr %s20, 3
          %s332 = smul.addr %s331, 128
          %s333 = scalar_lea.hbm %s3, %s332
          %s334 = sshll.u32 %s324, 4
          %s335 = int_to_ptr.vmem [resolvable:$true] %s334
          %340 = dma.vmem_to_hbm [thread:$0]  %s335, 384, %s333, %s321, 128, 128, 8
        $region40: #{tpu_custom_call.1} parent=31 // pred_fallthru
          _
      $region32: #{tpu_custom_call.1} parent=5 // pred_fallthru
        _
      %p341 = scmp.le.s32.totalorder 2, %s15
      // Predicated region
      $region41: #{tpu_custom_call.1} parent=5 // pred_check
        %p342 = pneg %p341
      $region42: #{tpu_custom_call.1} parent=5 // pred_check_branch
        %344 = sbr.rel (%p342) target = $region44
      $region43: #{tpu_custom_call.1} parent=5 // pred_region
        %s345 = ssub.s32 %s15, 2
        // Predicated region
        $region45: #{tpu_custom_call.1} parent=43 // pred_check
          %p346 = pneg %p112
        $region46: #{tpu_custom_call.1} parent=43 // pred_check_branch
          %348 = sbr.rel (%p346) target = $region48
        $region47: #{tpu_custom_call.1} parent=43 // pred_region
          %s349 = sand.u32 %s97, 1
          %s350 = scalar_lea.sflag [#allocation4], %s349
          %s351 = sand.u32 %s97, 1
          %s352 = smul.addr %s351, 24
          %s353 = scalar_lea.vmem [#allocation5], %s352
          %354 = dma.done %s350, 384
        $region48: #{tpu_custom_call.1} parent=43 // pred_fallthru
          _
      $region44: #{tpu_custom_call.1} parent=5 // pred_fallthru
        _
    $region6: #{tpu_custom_call.1} parent=1 // loop_footer
      %s19 = sadd.s32 1, %s15
    $region7: #{tpu_custom_call.1} parent=1 // loop_footer_branch
      %14 = sbr.rel target = $region3
    $region8: #{tpu_custom_call.1} parent=1 // loop_exit
      _
    %355 = vsyncpa [#allocation3], 1
    %s356 = scalar_lea.sflag [#allocation3], 1
    %357 = vsyncpa %s356, 1
    %358 = vsyncpa [#allocation4], 1
    %s359 = scalar_lea.sflag [#allocation4], 1
    %360 = vsyncpa %s359, 1

</llo_original>
